<compile_context>
chip_gen: v6e
topology: v6e:2x2x1
jax: 0.10.0
libtpu: 0.0.40
codegen_flags: <defaults>
</compile_context>

<pallas_src>
import functools

import jax
import jax.numpy as jnp
from jax.experimental import pallas as pl
from jax.experimental.pallas import tpu as pltpu

BG_VALUE = 255  # sentinel replaced in forward()


def _ce2d_kernel(x_ref, t_ref, sum_ref, cnt_ref, *, ignore_index, bg_replace):
    # x_ref:   (C, THW)  logits tile (classes on sublanes, pixels on lanes)
    # t_ref:   (1, THW)  int32 targets
    # sum_ref: (1, THW)  f32 running per-lane sum of -log p[target]   (output acc)
    # cnt_ref: (1, THW)  int32 running per-lane count of valid pixels (output acc)
    p = pl.program_id(1)

    @pl.when(p == 0)
    def _():
        sum_ref[...] = jnp.zeros_like(sum_ref)
        cnt_ref[...] = jnp.zeros_like(cnt_ref)

    x = x_ref[...].astype(jnp.float32)          # (C, THW)
    t = t_ref[...]                              # (1, THW) int32

    # targets[targets == 255] = ignore_index (or bg_replace)
    repl = ignore_index if bg_replace is None else bg_replace
    t = jnp.where(t == BG_VALUE, repl, t)
    valid = t != ignore_index                   # (1, THW) bool

    # numerically-stable log-softmax over the class (sublane) axis
    m = jnp.max(x, axis=0, keepdims=True)                       # (1, THW)
    xs = x - m
    lse = jnp.log(jnp.sum(jnp.exp(xs), axis=0, keepdims=True))  # (1, THW)

    # gather shifted logit of the target class via a one-hot mask over sublanes,
    # without materializing logp = xs - lse for the full tile.
    cls = jax.lax.broadcasted_iota(jnp.int32, x.shape, 0)        # (C, THW)
    onehot = (cls == t).astype(jnp.float32)                      # (C, THW)
    picked = jnp.sum(xs * onehot, axis=0, keepdims=True) - lse   # (1, THW) = log p[tgt]

    sum_ref[...] += jnp.where(valid, -picked, 0.0)
    cnt_ref[...] += valid.astype(jnp.int32)


def _pick_tile_hw(hw, c, itemsize, vmem_budget=12 * 1024 * 1024, max_tile=8192):
    """Largest 128-multiple divisor of hw whose double-buffered logits tile fits."""
    cap = max(128, (vmem_budget // max(1, 2 * c * itemsize)) // 128 * 128)
    cap = min(cap, max_tile, hw)
    best = None
    t = 128
    while t <= cap:
        if hw % t == 0:
            best = t
        t += 128
    if best is None:
        best = hw  # full spatial extent per image (block dim == full array dim)
    return best


def cross_entropy_loss_2d(outputs, targets, *, ignore_index=-100, bg_replace=None):
    """outputs: (N, C, H, W) float (f32 or bf16); targets: (N, H, W) int.

    Returns scalar f32 loss = mean over valid pixels of -log_softmax(outputs)[target].
    NOTE: if every pixel is ignored the result is NaN (matches PyTorch NLLLoss).
    """
    # TODO(synk): per-class NLLLoss `weight` (module default None) not implemented.
    N, C, H, W = outputs.shape
    HW = H * W

    # Free reshapes only — no transpose, no HBM copy of the logits.
    logits = outputs.reshape(N, C, HW)
    tgt = targets.astype(jnp.int32).reshape(N, 1, HW)

    tile_hw = _pick_tile_hw(HW, C, jnp.dtype(outputs.dtype).itemsize)
    assert HW % tile_hw == 0, "spatial size must be divisible by the chosen tile"
    n_tiles = HW // tile_hw
    grid = (N, n_tiles)

    kernel = functools.partial(
        _ce2d_kernel, ignore_index=ignore_index, bg_replace=bg_replace)

    sum_part, cnt_part = pl.pallas_call(
        kernel,
        out_shape=(
            jax.ShapeDtypeStruct((N, 1, tile_hw), jnp.float32),
            jax.ShapeDtypeStruct((N, 1, tile_hw), jnp.int32),
        ),
        grid_spec=pltpu.PrefetchScalarGridSpec(
            num_scalar_prefetch=0,
            grid=grid,
            in_specs=[
                pl.BlockSpec((pl.Squeezed(), C, tile_hw), lambda n, p: (n, 0, p)),
                pl.BlockSpec((pl.Squeezed(), 1, tile_hw), lambda n, p: (n, 0, p)),
            ],
            out_specs=(
                pl.BlockSpec((pl.Squeezed(), 1, tile_hw), lambda n, p: (n, 0, 0)),
                pl.BlockSpec((pl.Squeezed(), 1, tile_hw), lambda n, p: (n, 0, 0)),
            ),
        ),
        compiler_params=pltpu.CompilerParams(
            dimension_semantics=("parallel", "arbitrary")),
    )(logits, tgt)

    total = jnp.sum(sum_part)                       # tiny f32 reduce in XLA
    count = jnp.sum(cnt_part)                       # exact int32 valid-pixel count
    return total / count.astype(jnp.float32)


def _reference_loss(outputs, targets, ignore_index=-100):
    """Plain-JAX reference mirroring F.nll_loss(F.log_softmax(x,1), t)."""
    t = jnp.where(targets == BG_VALUE, ignore_index, targets).astype(jnp.int32)
    logp = jax.nn.log_softmax(outputs.astype(jnp.float32), axis=1)   # (N,C,H,W)
    valid = (t != ignore_index)
    t_safe = jnp.where(valid, t, 0)
    picked = jnp.take_along_axis(logp, t_safe[:, None, :, :], axis=1)[:, 0]  # (N,H,W)
    num = jnp.sum(jnp.where(valid, -picked, 0.0))
    den = jnp.sum(valid.astype(jnp.float32))
    return num / den


if __name__ == "__main__":
    key = jax.random.PRNGKey(0)
    k1, k2 = jax.random.split(key)

    N, C, H, W = 2, 4, 16, 16
    outputs = jax.random.normal(k1, (N, C, H, W), dtype=jnp.float32)
    targets = jax.random.randint(k2, (N, H, W), 0, C, dtype=jnp.int32)
    # mark a patch of background (255) pixels to exercise the ignore_index path
    targets = targets.at[0, :4, :].set(BG_VALUE)

    loss = cross_entropy_loss_2d(outputs, targets)
    loss = jax.block_until_ready(loss)

    ref = _reference_loss(outputs, targets)
    assert jnp.allclose(loss, ref, rtol=1e-5, atol=1e-5), (loss, ref)

    print("KERNEL_OK")
</pallas_src>

<mosaic_0001>
module attributes {stable_mosaic.version = 11 : i64} {
  func.func @_ce2d_kernel(%arg0: i32, %arg1: i32, %arg2: memref<1x4x256xf32, #tpu.memory_space<vmem>>, %arg3: memref<1x1x256xi32, #tpu.memory_space<vmem>>, %arg4: memref<1x1x256xf32, #tpu.memory_space<vmem>>, %arg5: memref<1x1x256xi32, #tpu.memory_space<vmem>>) attributes {dimension_semantics = [#tpu.dimension_semantics<parallel>, #tpu.dimension_semantics<arbitrary>], iteration_bounds = array<i64: 2, 1>, scalar_prefetch = 0 : i64, scratch_operands = 0 : i64, tpu.core_type = #tpu.core_type<tc>, window_params = [{transform_indices = @transform_0, window_bounds = array<i64: 1, 4, 256>}, {transform_indices = @transform_1, window_bounds = array<i64: 1, 1, 256>}, {transform_indices = @transform_2, window_bounds = array<i64: 1, 1, 256>}, {transform_indices = @transform_3, window_bounds = array<i64: 1, 1, 256>}]} {
    %c0_i32 = arith.constant 0 : i32
    %0 = arith.cmpi eq, %arg1, %c0_i32 : i32
    %1 = arith.extui %0 : i1 to i32
    %c0_i32_0 = arith.constant 0 : i32
    %2 = arith.cmpi ne, %1, %c0_i32_0 : i32
    scf.if %2 {
      %cst_23 = arith.constant 0.000000e+00 : f32
      %47 = vector.broadcast %cst_23 : f32 to vector<1x256xf32>
      %c0_24 = arith.constant 0 : index
      %c0_25 = arith.constant 0 : index
      %c0_26 = arith.constant 0 : index
      %48 = vector.load %arg4[%c0_24, %c0_25, %c0_26] : memref<1x1x256xf32, #tpu.memory_space<vmem>>, vector<1x1x256xf32>
      %49 = vector.shape_cast %48 : vector<1x1x256xf32> to vector<1x256xf32>
      %50 = vector.shape_cast %47 : vector<1x256xf32> to vector<1x1x256xf32>
      tpu.vector_store %arg4[%c0_24, %c0_25, %c0_26], %50 {strides = array<i32>} : memref<1x1x256xf32, #tpu.memory_space<vmem>>, vector<1x1x256xf32>,
      %c0_i32_27 = arith.constant 0 : i32
      %51 = vector.broadcast %c0_i32_27 : i32 to vector<1x256xi32>
      %c0_28 = arith.constant 0 : index
      %c0_29 = arith.constant 0 : index
      %c0_30 = arith.constant 0 : index
      %52 = vector.load %arg5[%c0_28, %c0_29, %c0_30] : memref<1x1x256xi32, #tpu.memory_space<vmem>>, vector<1x1x256xi32>
      %53 = vector.shape_cast %52 : vector<1x1x256xi32> to vector<1x256xi32>
      %54 = vector.shape_cast %51 : vector<1x256xi32> to vector<1x1x256xi32>
      tpu.vector_store %arg5[%c0_28, %c0_29, %c0_30], %54 {strides = array<i32>} : memref<1x1x256xi32, #tpu.memory_space<vmem>>, vector<1x1x256xi32>,
    } else {
    }
    %c0 = arith.constant 0 : index
    %c0_1 = arith.constant 0 : index
    %c0_2 = arith.constant 0 : index
    %3 = vector.load %arg2[%c0, %c0_1, %c0_2] : memref<1x4x256xf32, #tpu.memory_space<vmem>>, vector<1x4x256xf32>
    %4 = vector.shape_cast %3 : vector<1x4x256xf32> to vector<4x256xf32>
    %c0_3 = arith.constant 0 : index
    %c0_4 = arith.constant 0 : index
    %c0_5 = arith.constant 0 : index
    %5 = vector.load %arg3[%c0_3, %c0_4, %c0_5] : memref<1x1x256xi32, #tpu.memory_space<vmem>>, vector<1x1x256xi32>
    %6 = vector.shape_cast %5 : vector<1x1x256xi32> to vector<1x256xi32>
    %c255_i32 = arith.constant 255 : i32
    %7 = vector.broadcast %c255_i32 : i32 to vector<1x256xi32>
    %8 = arith.cmpi eq, %6, %7 : vector<1x256xi32>
    %c-100_i32 = arith.constant -100 : i32
    %9 = vector.broadcast %c-100_i32 : i32 to vector<1x256xi32>
    %10 = arith.select %8, %9, %6 : vector<1x256xi1>, vector<1x256xi32>
    %c-100_i32_6 = arith.constant -100 : i32
    %11 = vector.broadcast %c-100_i32_6 : i32 to vector<1x256xi32>
    %12 = arith.cmpi ne, %10, %11 : vector<1x256xi32>
    %cst = arith.constant dense<0xFF800000> : vector<256xf32>
    %13 = vector.multi_reduction <maximumf>, %4, %cst [0] : vector<4x256xf32> to vector<256xf32>
    %14 = vector.shape_cast %13 : vector<256xf32> to vector<1x256xf32>
    %15 = vector.broadcast %14 : vector<1x256xf32> to vector<4x256xf32>
    %16 = arith.subf %4, %15 : vector<4x256xf32>
    %17 = math.exp %16 : vector<4x256xf32>
    %cst_7 = arith.constant dense<0.000000e+00> : vector<256xf32>
    %18 = vector.multi_reduction <add>, %17, %cst_7 [0] : vector<4x256xf32> to vector<256xf32>
    %19 = vector.shape_cast %18 : vector<256xf32> to vector<1x256xf32>
    %20 = math.log %19 : vector<1x256xf32>
    %21 = tpu.iota {dimensions = array<i32: 0>} : vector<4x256xi32>
    %22 = vector.broadcast %10 : vector<1x256xi32> to vector<4x256xi32>
    %23 = arith.cmpi eq, %21, %22 : vector<4x256xi32>
    %24 = arith.extui %23 : vector<4x256xi1> to vector<4x256xi32>
    %25 = arith.sitofp %24 : vector<4x256xi32> to vector<4x256xf32>
    %26 = arith.mulf %16, %25 : vector<4x256xf32>
    %cst_8 = arith.constant dense<0.000000e+00> : vector<256xf32>
    %27 = vector.multi_reduction <add>, %26, %cst_8 [0] : vector<4x256xf32> to vector<256xf32>
    %28 = vector.shape_cast %27 : vector<256xf32> to vector<1x256xf32>
    %29 = arith.subf %28, %20 : vector<1x256xf32>
    %c0_9 = arith.constant 0 : index
    %c0_10 = arith.constant 0 : index
    %c0_11 = arith.constant 0 : index
    %30 = vector.load %arg4[%c0_9, %c0_10, %c0_11] : memref<1x1x256xf32, #tpu.memory_space<vmem>>, vector<1x1x256xf32>
    %31 = vector.shape_cast %30 : vector<1x1x256xf32> to vector<1x256xf32>
    %cst_12 = arith.constant 0.000000e+00 : f32
    %32 = vector.broadcast %cst_12 : f32 to vector<1x256xf32>
    %33 = arith.subf %32, %29 : vector<1x256xf32>
    %cst_13 = arith.constant 0.000000e+00 : f32
    %34 = vector.broadcast %cst_13 : f32 to vector<1x256xf32>
    %35 = arith.select %12, %33, %34 : vector<1x256xi1>, vector<1x256xf32>
    %36 = arith.addf %31, %35 : vector<1x256xf32>
    %c0_14 = arith.constant 0 : index
    %c0_15 = arith.constant 0 : index
    %c0_16 = arith.constant 0 : index
    %37 = vector.load %arg4[%c0_14, %c0_15, %c0_16] : memref<1x1x256xf32, #tpu.memory_space<vmem>>, vector<1x1x256xf32>
    %38 = vector.shape_cast %37 : vector<1x1x256xf32> to vector<1x256xf32>
    %39 = vector.shape_cast %36 : vector<1x256xf32> to vector<1x1x256xf32>
    tpu.vector_store %arg4[%c0_14, %c0_15, %c0_16], %39 {strides = array<i32>} : memref<1x1x256xf32, #tpu.memory_space<vmem>>, vector<1x1x256xf32>,
    %c0_17 = arith.constant 0 : index
    %c0_18 = arith.constant 0 : index
    %c0_19 = arith.constant 0 : index
    %40 = vector.load %arg5[%c0_17, %c0_18, %c0_19] : memref<1x1x256xi32, #tpu.memory_space<vmem>>, vector<1x1x256xi32>
    %41 = vector.shape_cast %40 : vector<1x1x256xi32> to vector<1x256xi32>
    %42 = arith.extui %12 : vector<1x256xi1> to vector<1x256xi32>
    %43 = arith.addi %41, %42 : vector<1x256xi32>
    %c0_20 = arith.constant 0 : index
    %c0_21 = arith.constant 0 : index
    %c0_22 = arith.constant 0 : index
    %44 = vector.load %arg5[%c0_20, %c0_21, %c0_22] : memref<1x1x256xi32, #tpu.memory_space<vmem>>, vector<1x1x256xi32>
    %45 = vector.shape_cast %44 : vector<1x1x256xi32> to vector<1x256xi32>
    %46 = vector.shape_cast %43 : vector<1x256xi32> to vector<1x1x256xi32>
    tpu.vector_store %arg5[%c0_20, %c0_21, %c0_22], %46 {strides = array<i32>} : memref<1x1x256xi32, #tpu.memory_space<vmem>>, vector<1x1x256xi32>,
    return
  }
  func.func @transform_0(%arg0: i32, %arg1: i32) -> (i32, i32, i32) {
    %c0_i32 = arith.constant 0 : i32
    %c0_i32_0 = arith.constant 0 : i32
    return %arg0, %c0_i32, %arg1 : i32, i32, i32
  }
  func.func @transform_1(%arg0: i32, %arg1: i32) -> (i32, i32, i32) {
    %c0_i32 = arith.constant 0 : i32
    %c0_i32_0 = arith.constant 0 : i32
    return %arg0, %c0_i32, %arg1 : i32, i32, i32
  }
  func.func @transform_2(%arg0: i32, %arg1: i32) -> (i32, i32, i32) {
    %c0_i32 = arith.constant 0 : i32
    %c0_i32_0 = arith.constant 0 : i32
    %c0_i32_1 = arith.constant 0 : i32
    return %arg0, %c0_i32, %c0_i32_0 : i32, i32, i32
  }
  func.func @transform_3(%arg0: i32, %arg1: i32) -> (i32, i32, i32) {
    %c0_i32 = arith.constant 0 : i32
    %c0_i32_0 = arith.constant 0 : i32
    %c0_i32_1 = arith.constant 0 : i32
    return %arg0, %c0_i32, %c0_i32_0 : i32, i32, i32
  }
}

</mosaic_0001>

<llo_original>
// kernel: tpu_custom_call.1
$region0: #{tpu_custom_call.1}
  #allocation0 [shape = 'u32[]', space=smem, size = 0x4, offset = 0x4, fixed_abs, tag = 'smem constant byte address 0x4 - core index']
  #allocation1 [shape = 'u32[144,128]{1,0:T(1,128)}', space=vmem, size = 0x12000, scoped, tag = 'internal scratch']
  %s0 = inlined_call_operand.hbm [shape: f32[2,4,256], index: 0, kind: input, shape index: {}]
  %s1 = inlined_call_operand.hbm [shape: s32[2,1,256], index: 1, kind: input, shape index: {}]
  %s2 = inlined_call_operand.hbm [shape: f32[2,1,256], index: 2, kind: output, shape index: {0}]
  %s3 = inlined_call_operand.hbm [shape: s32[2,1,256], index: 3, kind: output, shape index: {1}]
  %4 = xla_tuple %s2, %s3
  %s5 = sld [smem:[#allocation0]]
  $region61: #{tpu_custom_call.1} parent=0
    _
  %s7 = ssub.s32 1, %s5
  %s8 = scalar_select 0, %s7, %s5
  $region1: #{tpu_custom_call.1} parent=0
    #allocation2 [shape = 'u8[8192]{0}', space=vmem, size = 0x2000, scoped, tag = 'input window, operand 0']
    #allocation3 [shape = 's32[2]{0}', space=sflag, size = 0x8, scoped, tag = 'scoped memory for tpu_custom_call.1']
    #allocation4 [shape = 's32[2]{0}', space=sflag, size = 0x8, scoped, tag = 'scoped memory for tpu_custom_call.1']
    #allocation5 [shape = 'u8[2048]{0}', space=vmem, size = 0x800, scoped, tag = 'input window, operand 1']
    #allocation6 [shape = 's32[2]{0}', space=sflag, size = 0x8, scoped, tag = 'scoped memory for tpu_custom_call.1']
    #allocation7 [shape = 'u8[2048]{0}', space=vmem, size = 0x800, scoped, tag = 'output window, operand 0']
    #allocation8 [shape = 'u8[2048]{0}', space=vmem, size = 0x800, scoped, tag = 'output window, operand 1']
    #allocation9 [shape = 's32[2]{0}', space=sflag, size = 0x8, scoped, tag = 'scoped memory for tpu_custom_call.1']
    %9 = vsyncpa [#allocation3], 0
    %s10 = scalar_lea.sflag [#allocation3], 1
    %11 = vsyncpa %s10, 0
    %12 = vsyncpa [#allocation6], 0
    %s13 = scalar_lea.sflag [#allocation6], 1
    %14 = vsyncpa %s13, 0
    %15 = vsyncpa [#allocation4], 0
    %s16 = scalar_lea.sflag [#allocation4], 1
    %17 = vsyncpa %s16, 0
    %18 = vsyncpa [#allocation9], 0
    %s19 = scalar_lea.sflag [#allocation9], 1
    %20 = vsyncpa %s19, 0
    loop: start=0, step=1, limit=4
    $region2: #{tpu_custom_call.1} parent=1 // loop_pre_header
      _
    $region3: #{tpu_custom_call.1} parent=1 // loop_header
      %s22 = sphi 0, %s26
      %p23 = scmp.ge.s32.totalorder %s22, 4
      %s29 = sphi 0, %s41
      %s30 = sphi 0, %s37
      %s31 = sphi 0, %s29
      %s32 = sphi 0, %s30
      %s33 = sphi 0, %s31
      %s34 = sphi 0, %s32
      %s46 = sphi 0, %s48
      %s49 = sphi 0, %s46
      %s50 = sphi 0, %s49
      %s66 = sphi 0, %s50
      %s74 = sphi 0, %s76
      %s77 = sphi 0, %s74
      %s78 = sphi 0, %s77
      %s94 = sphi 0, %s78
      %s100 = sphi 0, %s102
      %s103 = sphi 0, %s100
      %s104 = sphi 0, %s103
      %s120 = sphi 0, %s104
      %s126 = sphi 0, %s128
      %s129 = sphi 0, %s126
      %s130 = sphi 0, %s129
      %s146 = sphi 0, %s130
    $region4: #{tpu_custom_call.1} parent=1 // loop_header_branch
      %25 = sbr.rel (%p23) target = $region8
    $region5: #{tpu_custom_call.1} parent=1 // loop_body
      %s27 = ssub.s32 %s22, 1
      %s28 = ssub.s32 %s22, 2
      %s35 = sadd.s32 1, %s30
      %p36 = scmp.ge.s32.totalorder %s35, 1
      %s37 = scalar_select %p36, 0, %s35
      %s38 = sadd.s32 1, %s29
      %s39 = scalar_select %p36, %s38, %s29
      %p40 = scmp.ge.s32.totalorder %s39, 2
      %s41 = scalar_select %p40, 0, %s39
      %s42 = ssub.s32 %s29, %s41
      %s43 = ssub.s32 %s30, %s37
      %s44 = sor.u32 %s42, %s43
      %p45 = scmp.eq.s32.totalorder %s44, 0
      %s47 = sadd.s32 %s46, 1
      %s48 = scalar_select %p45, %s46, %s47
      %p51 = pneg %p45
      %p52 = scmp.eq.s32.totalorder %s22, 1
      %p53 = por %p51, %p52
      %p54 = scmp.ne.s32.totalorder %s46, %s49
      %p55 = scmp.eq.s32.totalorder %s22, 0
      %p56 = por %p54, %p55
      %p57 = scmp.ne.s32.totalorder %s46, %s49
      %p58 = scmp.eq.s32.totalorder %s27, 1
      %p59 = por %p57, %p58
      %p60 = scmp.ne.s32.totalorder %s49, %s50
      %p61 = scmp.eq.s32.totalorder %s27, 0
      %p62 = por %p60, %p61
      %p63 = scmp.ne.s32.totalorder %s49, %s50
      %p64 = scmp.eq.s32.totalorder %s28, 1
      %p65 = por %p63, %p64
      %p67 = scmp.ne.s32.totalorder %s50, %s66
      %p68 = scmp.eq.s32.totalorder %s28, 0
      %p69 = por %p67, %p68
      %s70 = ssub.s32 %s29, %s41
      %s71 = ssub.s32 %s30, %s37
      %s72 = sor.u32 %s70, %s71
      %p73 = scmp.eq.s32.totalorder %s72, 0
      %s75 = sadd.s32 %s74, 1
      %s76 = scalar_select %p73, %s74, %s75
      %p79 = pneg %p73
      %p80 = scmp.eq.s32.totalorder %s22, 1
      %p81 = por %p79, %p80
      %p82 = scmp.ne.s32.totalorder %s74, %s77
      %p83 = scmp.eq.s32.totalorder %s22, 0
      %p84 = por %p82, %p83
      %p85 = scmp.ne.s32.totalorder %s74, %s77
      %p86 = scmp.eq.s32.totalorder %s27, 1
      %p87 = por %p85, %p86
      %p88 = scmp.ne.s32.totalorder %s77, %s78
      %p89 = scmp.eq.s32.totalorder %s27, 0
      %p90 = por %p88, %p89
      %p91 = scmp.ne.s32.totalorder %s77, %s78
      %p92 = scmp.eq.s32.totalorder %s28, 1
      %p93 = por %p91, %p92
      %p95 = scmp.ne.s32.totalorder %s78, %s94
      %p96 = scmp.eq.s32.totalorder %s28, 0
      %p97 = por %p95, %p96
      %s98 = ssub.s32 %s29, %s41
      %p99 = scmp.eq.s32.totalorder %s98, 0
      %s101 = sadd.s32 %s100, 1
      %s102 = scalar_select %p99, %s100, %s101
      %p105 = pneg %p99
      %p106 = scmp.eq.s32.totalorder %s22, 1
      %p107 = por %p105, %p106
      %p108 = scmp.ne.s32.totalorder %s100, %s103
      %p109 = scmp.eq.s32.totalorder %s22, 0
      %p110 = por %p108, %p109
      %p111 = scmp.ne.s32.totalorder %s100, %s103
      %p112 = scmp.eq.s32.totalorder %s27, 1
      %p113 = por %p111, %p112
      %p114 = scmp.ne.s32.totalorder %s103, %s104
      %p115 = scmp.eq.s32.totalorder %s27, 0
      %p116 = por %p114, %p115
      %p117 = scmp.ne.s32.totalorder %s103, %s104
      %p118 = scmp.eq.s32.totalorder %s28, 1
      %p119 = por %p117, %p118
      %p121 = scmp.ne.s32.totalorder %s104, %s120
      %p122 = scmp.eq.s32.totalorder %s28, 0
      %p123 = por %p121, %p122
      %s124 = ssub.s32 %s29, %s41
      %p125 = scmp.eq.s32.totalorder %s124, 0
      %s127 = sadd.s32 %s126, 1
      %s128 = scalar_select %p125, %s126, %s127
      %p131 = pneg %p125
      %p132 = scmp.eq.s32.totalorder %s22, 1
      %p133 = por %p131, %p132
      %p134 = scmp.ne.s32.totalorder %s126, %s129
      %p135 = scmp.eq.s32.totalorder %s22, 0
      %p136 = por %p134, %p135
      %p137 = scmp.ne.s32.totalorder %s126, %s129
      %p138 = scmp.eq.s32.totalorder %s27, 1
      %p139 = por %p137, %p138
      %p140 = scmp.ne.s32.totalorder %s129, %s130
      %p141 = scmp.eq.s32.totalorder %s27, 0
      %p142 = por %p140, %p141
      %p143 = scmp.ne.s32.totalorder %s129, %s130
      %p144 = scmp.eq.s32.totalorder %s28, 1
      %p145 = por %p143, %p144
      %p147 = scmp.ne.s32.totalorder %s130, %s146
      %p148 = scmp.eq.s32.totalorder %s28, 0
      %p149 = por %p147, %p148
      %p150 = scmp.le.s32.totalorder 1, %s22
      %p151 = scmp.lt.s32.totalorder %s22, 3
      %p152 = pnand %p150, %p151
      %p153 = pneg %p152
      // Predicated region
      $region9: #{tpu_custom_call.1} parent=5 // pred_check
        _
      $region10: #{tpu_custom_call.1} parent=5 // pred_check_branch
        %155 = sbr.rel (%p152) target = $region12
      $region11: #{tpu_custom_call.1} parent=5 // pred_region
        %s156 = ssub.s32 %s22, 1
      $region12: #{tpu_custom_call.1} parent=5 // pred_fallthru
        _
      %p157 = scmp.lt.s32.totalorder %s22, 2
      // Predicated region
      $region13: #{tpu_custom_call.1} parent=5 // pred_check
        %p158 = pneg %p157
      $region14: #{tpu_custom_call.1} parent=5 // pred_check_branch
        %160 = sbr.rel (%p158) target = $region16
      $region15: #{tpu_custom_call.1} parent=5 // pred_region
        // Predicated region
        $region17: #{tpu_custom_call.1} parent=15 // pred_check
          %p161 = pneg %p56
        $region18: #{tpu_custom_call.1} parent=15 // pred_check_branch
          %163 = sbr.rel (%p161) target = $region20
        $region19: #{tpu_custom_call.1} parent=15 // pred_region
          %s164 = sand.u32 %s46, 1
          %s165 = scalar_lea.sflag [#allocation3], %s164
          %s166 = sand.u32 %s46, 1
          %s167 = smul.addr %s166, 8
          %s168 = scalar_lea.vmem [#allocation2], %s167
          %s169 = smul.u32 2, %s30
          %s171 = ssub.s32 128, 128
          %172 = vsyncadd %s165, %s171
          %s173 = smul.addr %s29, 2
          %s174 = sadd.s32 %s169, %s173
          %s175 = smul.addr %s174, 64
          %s176 = scalar_lea.hbm %s0, %s175
          %s178 = sshll.u32 %s168, 4
          %s179 = int_to_ptr.vmem [resolvable:$true] %s178
          %181 = dma.hbm_to_vmem [thread:$0]  %s176, 128, %s179, %s165
        $region20: #{tpu_custom_call.1} parent=15 // pred_fallthru
          _
        // Predicated region
        $region21: #{tpu_custom_call.1} parent=15 // pred_check
          %p182 = pneg %p84
        $region22: #{tpu_custom_call.1} parent=15 // pred_check_branch
          %184 = sbr.rel (%p182) target = $region24
        $region23: #{tpu_custom_call.1} parent=15 // pred_region
          %s185 = sand.u32 %s74, 1
          %s186 = scalar_lea.sflag [#allocation6], %s185
          %s187 = sand.u32 %s74, 1
          %s188 = smul.addr %s187, 2
          %s189 = scalar_lea.vmem [#allocation5], %s188
          %s190 = smul.u32 2, %s30
          %s192 = ssub.s32 32, 32
          %193 = vsyncadd %s186, %s192
          %s194 = smul.addr %s29, 2
          %s195 = sadd.s32 %s190, %s194
          %s196 = smul.addr %s195, 16
          %s197 = scalar_lea.hbm %s1, %s196
          %s199 = sshll.u32 %s189, 4
          %s200 = int_to_ptr.vmem [resolvable:$true] %s199
          %202 = dma.hbm_to_vmem [thread:$0]  %s197, 32, %s200, %s186
        $region24: #{tpu_custom_call.1} parent=15 // pred_fallthru
          _
      $region16: #{tpu_custom_call.1} parent=5 // pred_fallthru
        _
      %p203 = scmp.le.s32.totalorder 1, %s22
      %p204 = scmp.lt.s32.totalorder %s22, 3
      %p205 = pnand %p203, %p204
      %p206 = pneg %p205
      // Predicated region
      $region25: #{tpu_custom_call.1} parent=5 // pred_check
        _
      $region26: #{tpu_custom_call.1} parent=5 // pred_check_branch
        %208 = sbr.rel (%p205) target = $region28
      $region27: #{tpu_custom_call.1} parent=5 // pred_region
        %s209 = ssub.s32 %s22, 1
        %s210 = sand.u32 %s49, 1
        %s211 = scalar_lea.sflag [#allocation3], %s210
        %s212 = sand.u32 %s49, 1
        %s213 = smul.addr %s212, 8
        %s214 = scalar_lea.vmem [#allocation2], %s213
        // Predicated region
        $region29: #{tpu_custom_call.1} parent=27 // pred_check
          %p215 = pneg %p62
        $region30: #{tpu_custom_call.1} parent=27 // pred_check_branch
          %217 = sbr.rel (%p215) target = $region32
        $region31: #{tpu_custom_call.1} parent=27 // pred_region
          %218 = dma.done %s211, 128
        $region32: #{tpu_custom_call.1} parent=27 // pred_fallthru
          _
        %s219 = sand.u32 %s77, 1
        %s220 = scalar_lea.sflag [#allocation6], %s219
        %s221 = sand.u32 %s77, 1
        %s222 = smul.addr %s221, 2
        %s223 = scalar_lea.vmem [#allocation5], %s222
        // Predicated region
        $region33: #{tpu_custom_call.1} parent=27 // pred_check
          %p224 = pneg %p90
        $region34: #{tpu_custom_call.1} parent=27 // pred_check_branch
          %226 = sbr.rel (%p224) target = $region36
        $region35: #{tpu_custom_call.1} parent=27 // pred_region
          %227 = dma.done %s220, 32
        $region36: #{tpu_custom_call.1} parent=27 // pred_fallthru
          _
        %s228 = sand.u32 %s49, 1
        %s229 = scalar_lea.sflag [#allocation3], %s228
        %s230 = sand.u32 %s49, 1
        %s231 = smul.addr %s230, 8
        %s232 = scalar_lea.vmem [#allocation2], %s231
        %p233 = pneg %p62
        %p234 = pneg %p59
        %s235 = sand.u32 %s77, 1
        %s236 = scalar_lea.sflag [#allocation6], %s235
        %s237 = sand.u32 %s77, 1
        %s238 = smul.addr %s237, 2
        %s239 = scalar_lea.vmem [#allocation5], %s238
        %p240 = pneg %p90
        %p241 = pneg %p87
        %p242 = pneg %p116
        %p243 = pneg %p113
        %s244 = sand.u32 %s103, 1
        %s245 = scalar_lea.sflag [#allocation4], %s244
        %s246 = sand.u32 %s103, 1
        %s247 = smul.addr %s246, 2
        %s248 = scalar_lea.vmem [#allocation7], %s247
        %p249 = pneg %p142
        %p250 = pneg %p139
        %s251 = sand.u32 %s129, 1
        %s252 = scalar_lea.sflag [#allocation9], %s251
        %s253 = sand.u32 %s129, 1
        %s254 = smul.addr %s253, 2
        %s255 = scalar_lea.vmem [#allocation8], %s254
        %s256 = smul.u32 2, %s32
        %s257 = smul.u32 2, %s32
        %p258 = scmp.eq.s32.totalorder %s32, 0
        // Predicated region
        $region37: #{tpu_custom_call.1} parent=27 // pred_check
          %p259 = pneg %p258
        $region38: #{tpu_custom_call.1} parent=27 // pred_check_branch
          %261 = sbr.rel (%p259) target = $region40
        $region39: #{tpu_custom_call.1} parent=27 // pred_region
          %v262 = vlaneseq
          %vm263 = vcmp.ge.s32.totalorder %v262, 0
          %vm264 = vcmp.lt.s32.totalorder %v262, 256
          %vm265 = vmand %vm263, %vm264
          %266 = vst.msk [vmem:[%s248] sm:$0x3] %vm265, 0.0
          %267 = vst.msk [vmem:[%s255] sm:$0x3] %vm265, 0
        $region40: #{tpu_custom_call.1} parent=27 // pred_fallthru
          _
        %v268 = vld [vmem:[%s214] sm:$0xff]
        %v269 = vld [vmem:[%s223] sm:$0x3]
        %vm270 = vcmp.eq.s32.totalorder %v269, 255
        %v271 = vsel %vm270, 4294967196, %v269
        %vm272 = vcmp.ne.s32.totalorder %v271, 4294967196
        %v274 = vcombine.high %v268, %v268
        %vm276 = vcmask 1043456
        %v277 = vsel %vm276, %v268, -inf
        %v278 = vrot.slane %v277, 4
        %v279 = vmax.f32 %v277, %v278
        %v280 = vrot.slane %v279, 2
        %v281 = vmax.f32 %v279, %v280
        %v282 = vrot.slane %v281, 1
        %v283 = vmax.f32 %v281, %v282
        %v284 = vsel %vm276, %v274, -inf
        %v285 = vrot.slane %v284, 4
        %v286 = vmax.f32 %v284, %v285
        %v287 = vrot.slane %v286, 2
        %v288 = vmax.f32 %v286, %v287
        %v289 = vrot.slane %v288, 1
        %v290 = vmax.f32 %v288, %v289
        %v293 = vcombine.low %v283, %v290
        %v295 = vsub.f32 %v268, %v293
        %v296 = vmul.f32 %v295, 1.442695
        %v297 = vpow.pop %v296
        %v299 = vcombine.high %v297, %v297
        %v301 = vsel %vm276, %v297, 0.0
        %v302 = vrot.slane %v301, 4
        %v303 = vadd.f32 %v301, %v302
        %v304 = vrot.slane %v303, 2
        %v305 = vadd.f32 %v303, %v304
        %v306 = vrot.slane %v305, 1
        %v307 = vadd.f32 %v305, %v306
        %v308 = vsel %vm276, %v299, 0.0
        %v309 = vrot.slane %v308, 4
        %v310 = vadd.f32 %v308, %v309
        %v311 = vrot.slane %v310, 2
        %v312 = vadd.f32 %v310, %v311
        %v313 = vrot.slane %v312, 1
        %v314 = vadd.f32 %v312, %v313
        %v315 = vlog2.pop %v307
        %v316 = vmul.f32 %v315, 0.6931472
        %v317 = vlog2.pop %v314
        %v318 = vmul.f32 %v317, 0.6931472
        %v319 = vlaneseq
        %v320 = vshrl.u32 %v319, 7
        %v321 = vlaneseq
        %v322 = vshrl.u32 %v321, 7
        %v323 = vsub.s32 0, %v322
        %v324 = vrot.slane %v271, %v323
        %v325 = vlaneseq
        %v326 = vshrl.u32 %v325, 7
        %v327 = vsub.s32 1, %v326
        %v328 = vrot.slane %v271, %v327
        %vm329 = vcmp.eq.s32.totalorder %v320, %v324
        %vm330 = vcmp.eq.s32.totalorder %v320, %v328
        %v331 = vsel %vm329, 1, 0
        %v332 = vsel %vm330, 1, 0
        %v333 = vcvt.s32.f32 %v331
        %v334 = vcvt.s32.f32 %v332
        %v337 = vcombine.low %v333, %v334
        %v339 = vmul.f32 %v295, %v337
        %v341 = vcombine.high %v339, %v339
        %v343 = vsel %vm276, %v339, 0.0
        %v344 = vrot.slane %v343, 4
        %v345 = vadd.f32 %v343, %v344
        %v346 = vrot.slane %v345, 2
        %v347 = vadd.f32 %v345, %v346
        %v348 = vrot.slane %v347, 1
        %v349 = vadd.f32 %v347, %v348
        %v350 = vsel %vm276, %v341, 0.0
        %v351 = vrot.slane %v350, 4
        %v352 = vadd.f32 %v350, %v351
        %v353 = vrot.slane %v352, 2
        %v354 = vadd.f32 %v352, %v353
        %v355 = vrot.slane %v354, 1
        %v356 = vadd.f32 %v354, %v355
        %v357 = vsub.f32 %v349, %v316
        %v358 = vsub.f32 %v356, %v318
        %v359 = vld [vmem:[%s248] sm:$0x3]
        %v360 = vsub.f32 0.0, %v357
        %v361 = vsub.f32 0.0, %v358
        %v364 = vcombine.low %v360, %v361
        %v366 = vunpack.c.l.s4 1966171168
        %v367 = vunpack.c.0.s8 %v366
        %v368 = vlaneseq
        %v369 = vshrl.u32 %v368, 7
        %v370 = vsub.s32 %v367, %v369
        %v371 = vrot.slane %v364, %v370
        %v373 = vunpack.c.l.s4 1966171168
        %v374 = vunpack.c.0.s8 %v373
        %v375 = vlaneseq
        %v376 = vshrl.u32 %v375, 7
        %v377 = vsub.s32 %v374, %v376
        %v378 = vrot.slane %v371, %v377
        %v380 = vsel %vm272, %v378, 0.0
        %v381 = vadd.f32 %v359, %v380
        %v382 = vlaneseq
        %vm383 = vcmp.ge.s32.totalorder %v382, 0
        %vm384 = vcmp.lt.s32.totalorder %v382, 256
        %vm385 = vmand %vm383, %vm384
        %386 = vst.msk [vmem:[%s248] sm:$0x3] %vm385, %v381
        %v387 = vld [vmem:[%s255] sm:$0x3]
        %v388 = vsel %vm272, 1, 0
        %v389 = vadd.s32 %v387, %v388
        %390 = vst.msk [vmem:[%s255] sm:$0x3] %vm385, %v389
        %s391 = sand.u32 %s103, 1
        %s392 = scalar_lea.sflag [#allocation4], %s391
        %s393 = sand.u32 %s103, 1
        %s394 = smul.addr %s393, 2
        %s395 = scalar_lea.vmem [#allocation7], %s394
        %s396 = sand.u32 %s129, 1
        %s397 = scalar_lea.sflag [#allocation9], %s396
        %s398 = sand.u32 %s129, 1
        %s399 = smul.addr %s398, 2
        %s400 = scalar_lea.vmem [#allocation8], %s399
        // Predicated region
        $region41: #{tpu_custom_call.1} parent=27 // pred_check
          %p401 = pneg %p113
        $region42: #{tpu_custom_call.1} parent=27 // pred_check_branch
          %403 = sbr.rel (%p401) target = $region44
        $region43: #{tpu_custom_call.1} parent=27 // pred_region
          %s405 = ssub.s32 32, 32
          %406 = vsyncadd %s392, %s405
          %s407 = smul.addr %s31, 2
          %s408 = smul.addr %s407, 16
          %s409 = scalar_lea.hbm %s2, %s408
          %s411 = sshll.u32 %s395, 4
          %s412 = int_to_ptr.vmem [resolvable:$true] %s411
          %414 = dma.vmem_to_hbm [thread:$0]  %s412, 32, %s409, %s392
        $region44: #{tpu_custom_call.1} parent=27 // pred_fallthru
          _
        // Predicated region
        $region45: #{tpu_custom_call.1} parent=27 // pred_check
          %p415 = pneg %p139
        $region46: #{tpu_custom_call.1} parent=27 // pred_check_branch
          %417 = sbr.rel (%p415) target = $region48
        $region47: #{tpu_custom_call.1} parent=27 // pred_region
          %s419 = ssub.s32 32, 32
          %420 = vsyncadd %s397, %s419
          %s421 = smul.addr %s31, 2
          %s422 = smul.addr %s421, 16
          %s423 = scalar_lea.hbm %s3, %s422
          %s425 = sshll.u32 %s400, 4
          %s426 = int_to_ptr.vmem [resolvable:$true] %s425
          %428 = dma.vmem_to_hbm [thread:$0]  %s426, 32, %s423, %s397
        $region48: #{tpu_custom_call.1} parent=27 // pred_fallthru
          _
      $region28: #{tpu_custom_call.1} parent=5 // pred_fallthru
        _
      %p429 = scmp.le.s32.totalorder 2, %s22
      // Predicated region
      $region49: #{tpu_custom_call.1} parent=5 // pred_check
        %p430 = pneg %p429
      $region50: #{tpu_custom_call.1} parent=5 // pred_check_branch
        %432 = sbr.rel (%p430) target = $region52
      $region51: #{tpu_custom_call.1} parent=5 // pred_region
        %s433 = ssub.s32 %s22, 2
        // Predicated region
        $region53: #{tpu_custom_call.1} parent=51 // pred_check
          %p434 = pneg %p119
        $region54: #{tpu_custom_call.1} parent=51 // pred_check_branch
          %436 = sbr.rel (%p434) target = $region56
        $region55: #{tpu_custom_call.1} parent=51 // pred_region
          %s437 = sand.u32 %s104, 1
          %s438 = scalar_lea.sflag [#allocation4], %s437
          %s439 = sand.u32 %s104, 1
          %s440 = smul.addr %s439, 2
          %s441 = scalar_lea.vmem [#allocation7], %s440
          %442 = dma.done %s438, 32
        $region56: #{tpu_custom_call.1} parent=51 // pred_fallthru
          _
        // Predicated region
        $region57: #{tpu_custom_call.1} parent=51 // pred_check
          %p443 = pneg %p145
        $region58: #{tpu_custom_call.1} parent=51 // pred_check_branch
          %445 = sbr.rel (%p443) target = $region60
        $region59: #{tpu_custom_call.1} parent=51 // pred_region
          %s446 = sand.u32 %s130, 1
          %s447 = scalar_lea.sflag [#allocation9], %s446
          %s448 = sand.u32 %s130, 1
          %s449 = smul.addr %s448, 2
          %s450 = scalar_lea.vmem [#allocation8], %s449
          %451 = dma.done %s447, 32
        $region60: #{tpu_custom_call.1} parent=51 // pred_fallthru
          _
      $region52: #{tpu_custom_call.1} parent=5 // pred_fallthru
        _
    $region6: #{tpu_custom_call.1} parent=1 // loop_footer
      %s26 = sadd.s32 1, %s22
    $region7: #{tpu_custom_call.1} parent=1 // loop_footer_branch
      %21 = sbr.rel target = $region3
    $region8: #{tpu_custom_call.1} parent=1 // loop_exit
      _
    %452 = vsyncpa [#allocation3], 1
    %s453 = scalar_lea.sflag [#allocation3], 1
    %454 = vsyncpa %s453, 1
    %455 = vsyncpa [#allocation6], 1
    %s456 = scalar_lea.sflag [#allocation6], 1
    %457 = vsyncpa %s456, 1
    %458 = vsyncpa [#allocation4], 1
    %s459 = scalar_lea.sflag [#allocation4], 1
    %460 = vsyncpa %s459, 1
    %461 = vsyncpa [#allocation9], 1
    %s462 = scalar_lea.sflag [#allocation9], 1
    %463 = vsyncpa %s462, 1

</llo_original>
